<compile_context>
chip_gen: v7x
topology: tpu7x:2x2x1
jax: 0.10.0
libtpu: 0.0.40
codegen_flags: <defaults>
</compile_context>

<pallas_src>
import jax
import jax.numpy as jnp
from jax.experimental import pallas as pl
from jax.experimental.pallas import tpu as pltpu

LANES = 128
_WIDTH_CANDIDATES = (4096, 2048, 1024, 512, 256, 128)


def _silu_kernel(x_ref, o_ref):
    x = x_ref[...]
    # f32 compute for accuracy; the kernel is HBM-bound so the extra VPU/EUP
    # work is free filler under the DMA shadow (and mandatory on v5e anyway).
    xf = x.astype(jnp.float32)
    o_ref[...] = (xf * jax.nn.sigmoid(xf)).astype(o_ref.dtype)


def _silu_xla(x):
    xf = x.astype(jnp.float32)
    return (xf * jax.nn.sigmoid(xf)).astype(x.dtype)


def _sublane_multiple(dtype):
    itemsize = jnp.dtype(dtype).itemsize
    if itemsize >= 4:
        return 8
    if itemsize == 2:
        return 16
    return 32


def _round_up(a, b):
    return -(-a // b) * b


def _hw_params():
    """(target_block_bytes, vmem_limit_bytes) derived from the TPU generation.

    Misclassification only costs a few percent; defaults are safe everywhere.
    """
    target = 4 * 1024 * 1024        # v5e / v6e: ~4 MiB blocks (measured sweet spot)
    vmem_limit = 32 * 1024 * 1024
    try:
        vmem_cap = pltpu.get_tpu_info().vmem_capacity_bytes
        if vmem_cap <= 64 * 1024 * 1024:
            # v7x-class core: 64 MiB VMEM, ~3.2 TB/s HBM -> bigger blocks so the
            # fixed per-grid-step overhead is amortized; budget leaves headroom
            # for double-buffered in+out plus any f32 temp of a bf16 block.
            target = 6 * 1024 * 1024
            vmem_limit = 48 * 1024 * 1024
    except Exception:
        pass
    return target, vmem_limit


def _choose_width(n, sub):
    """Widest lane-dense width dividing n, preferring >= `sub` rows so vregs
    are sublane-dense (not a (1, W) single-sublane layout)."""
    widest = LANES
    for cand in _WIDTH_CANDIDATES:
        if n % cand == 0:
            if widest == LANES:
                widest = cand
            if n // cand >= sub:
                return cand
    return widest


def _choose_block_rows(rows, sub, target_rows, min_blocks):
    """Sublane-aligned row tile.

    Goals: (a) >= min_blocks grid steps (pipeline overlap + v7x 2-TC sharding),
    (b) blocks no larger than ~target_rows, (c) prefer an exact divisor of
    `rows` with an even number of blocks (no skinny masked remainder block),
    but never shrink the block by more than ~2x just to divide exactly.
    """
    if rows <= sub:
        return rows                                   # full extent (legal)
    if min_blocks <= 1 and rows <= target_rows:
        return rows                                   # single full block
    cap = max(sub, min(target_rows, (rows // max(min_blocks, 1)) // sub * sub))
    if rows % sub == 0:
        units = rows // sub
        u_cap = max(1, min(cap // sub, units))
        u_min = max(1, u_cap // 2)                    # stay within 2x of cap
        best_any = None
        for u in range(u_cap, u_min - 1, -1):
            if units % u == 0:
                if best_any is None:
                    best_any = u
                if (units // u) % 2 == 0:             # even #blocks preferred
                    return u * sub
        if best_any is not None:
            return best_any * sub
    # Fallback: rounded-up tile; final block is partial (masked stores) but
    # still nearly full.
    nb = max(min_blocks, -(-rows // cap))
    if nb > 1 and nb % 2:
        nb += 1
    return max(sub, min(rows, _round_up(-(-rows // nb), sub)))


def _silu_pallas_flat(flat):
    """SiLU over a flat array whose length is a multiple of 128."""
    dtype = flat.dtype
    n = flat.shape[0]
    sub = _sublane_multiple(dtype)
    itemsize = jnp.dtype(dtype).itemsize
    target_block_bytes, vmem_limit = _hw_params()

    W = _choose_width(n, sub)
    rows = n // W
    row_bytes = W * itemsize
    total_bytes = n * itemsize

    # Minimum grid steps: anything big enough to matter gets >=2 (pref. 4)
    # blocks so v7x can shard the "parallel" axis across both TensorCores and
    # the software pipeline actually overlaps read/compute/write.
    if total_bytes <= (512 << 10):
        min_blocks = 1
    elif total_bytes <= (2 << 20):
        min_blocks = 2
    else:
        min_blocks = 4

    target_rows = max(sub, (target_block_bytes // row_bytes) // sub * sub)
    block_rows = _choose_block_rows(rows, sub, target_rows, min_blocks)

    x2d = flat.reshape(rows, W)
    out2d = pl.pallas_call(
        _silu_kernel,
        out_shape=jax.ShapeDtypeStruct((rows, W), dtype),
        grid_spec=pltpu.PrefetchScalarGridSpec(
            num_scalar_prefetch=0,
            grid=(pl.cdiv(rows, block_rows),),
            in_specs=[pl.BlockSpec((block_rows, W), lambda i: (i, 0))],
            out_specs=pl.BlockSpec((block_rows, W), lambda i: (i, 0)),
        ),
        compiler_params=pltpu.CompilerParams(
            dimension_semantics=("parallel",),
            vmem_limit_bytes=vmem_limit,
        ),
    )(x2d)
    return out2d.reshape(-1)


def nonlinearity(x):
    """Forward pass of the PyTorch `nonlinearity` module (dropout disabled)."""
    orig_shape = x.shape
    n = x.size
    if n == 0:
        return x
    flat = x.reshape(-1)

    n_main = (n // LANES) * LANES
    tail = n - n_main
    if n_main == 0:
        # <128 elements: a kernel launch is pure overhead.
        return _silu_xla(flat).reshape(orig_shape)

    main = flat[:n_main] if tail else flat
    out_main = _silu_pallas_flat(main)
    if tail:
        # Ragged path: kernel handles the 128-aligned prefix; the <=127-element
        # tail is a tiny XLA op (no full-array pad/slice round trips).
        out_flat = jnp.concatenate([out_main, _silu_xla(flat[n_main:])])
    else:
        out_flat = out_main
    return out_flat.reshape(orig_shape)


def _ref_silu(x):
    xf = x.astype(jnp.float32)
    return (xf * jax.nn.sigmoid(xf)).astype(x.dtype)


if __name__ == "__main__":
    key = jax.random.PRNGKey(0)
    k1, k2, k3 = jax.random.split(key, 3)

    # Main case: NCHW conv-net activation, numel multiple of 128, single block.
    x = jax.random.normal(key, (2, 4, 16, 16), dtype=jnp.float32)
    out = jax.block_until_ready(nonlinearity(x))
    assert out.shape == x.shape and out.dtype == x.dtype
    assert jnp.allclose(out, _ref_silu(x), atol=1e-6, rtol=1e-6)

    # Larger case: exercises the multi-block "parallel" grid path (~1 MiB).
    xl = jax.random.normal(k1, (4, 64, 32, 32), dtype=jnp.float32)
    outl = jax.block_until_ready(nonlinearity(xl))
    assert jnp.allclose(outl, _ref_silu(xl), atol=1e-6, rtol=1e-6)

    # Ragged case with a 128-aligned prefix + XLA tail (numel = 165).
    xr = jax.random.normal(k2, (3, 5, 11), dtype=jnp.float32)
    outr = jax.block_until_ready(nonlinearity(xr))
    assert outr.shape == xr.shape
    assert jnp.allclose(outr, _ref_silu(xr), atol=1e-6, rtol=1e-6)

    # Tiny (<128 elements) case: pure-XLA fallback path.
    xt = jax.random.normal(k2, (3, 5, 7), dtype=jnp.float32)
    outt = jax.block_until_ready(nonlinearity(xt))
    assert jnp.allclose(outt, _ref_silu(xt), atol=1e-6, rtol=1e-6)

    # bf16 case: exercises the dtype-aware (16-sublane) tiling.
    xb = jax.random.normal(k3, (2, 4, 16, 16), dtype=jnp.bfloat16)
    outb = jax.block_until_ready(nonlinearity(xb))
    assert outb.dtype == jnp.bfloat16
    assert jnp.allclose(outb.astype(jnp.float32),
                        _ref_silu(xb).astype(jnp.float32),
                        atol=1e-2, rtol=1e-2)

    print("KERNEL_OK")
</pallas_src>

<mosaic_0001>
module attributes {stable_mosaic.version = 11 : i64} {
  func.func @_silu_kernel(%arg0: i32, %arg1: memref<8x256xf32, #tpu.memory_space<vmem>>, %arg2: memref<8x256xf32, #tpu.memory_space<vmem>>) attributes {dimension_semantics = [#tpu.dimension_semantics<parallel>], iteration_bounds = array<i64: 1>, scalar_prefetch = 0 : i64, scratch_operands = 0 : i64, tpu.core_type = #tpu.core_type<tc>, window_params = [{transform_indices = @transform_0, window_bounds = array<i64: 8, 256>}, {transform_indices = @transform_1, window_bounds = array<i64: 8, 256>}]} {
    %c0 = arith.constant 0 : index
    %c0_0 = arith.constant 0 : index
    %0 = vector.load %arg1[%c0, %c0_0] : memref<8x256xf32, #tpu.memory_space<vmem>>, vector<8x256xf32>
    %1 = arith.negf %0 : vector<8x256xf32>
    %2 = math.exp %1 : vector<8x256xf32>
    %cst = arith.constant 1.000000e+00 : f32
    %3 = vector.broadcast %cst : f32 to vector<8x256xf32>
    %4 = arith.addf %3, %2 : vector<8x256xf32>
    %5 = arith.divf %3, %4 : vector<8x256xf32>
    %6 = arith.mulf %0, %5 : vector<8x256xf32>
    %c0_1 = arith.constant 0 : index
    %c0_2 = arith.constant 0 : index
    %7 = vector.load %arg2[%c0_1, %c0_2] : memref<8x256xf32, #tpu.memory_space<vmem>>, vector<8x256xf32>
    tpu.vector_store %arg2[%c0_1, %c0_2], %6 {strides = array<i32>} : memref<8x256xf32, #tpu.memory_space<vmem>>, vector<8x256xf32>,
    return
  }
  func.func @transform_0(%arg0: i32) -> (i32, i32) {
    %c0_i32 = arith.constant 0 : i32
    %c0_i32_0 = arith.constant 0 : i32
    return %arg0, %c0_i32 : i32, i32
  }
  func.func @transform_1(%arg0: i32) -> (i32, i32) {
    %c0_i32 = arith.constant 0 : i32
    %c0_i32_0 = arith.constant 0 : i32
    return %arg0, %c0_i32 : i32, i32
  }
}

</mosaic_0001>

<llo_original>
// kernel: tpu_custom_call.1
$region0: #{tpu_custom_call.1}
  #allocation0 [shape = 'u32[]', space=smem, size = 0x4, offset = 0x4, fixed_abs, tag = 'smem constant byte address 0x4 - core index']
  #allocation1 [shape = 'u32[144,128]{1,0:T(1,128)}', space=vmem, size = 0x12000, scoped, tag = 'internal scratch']
  %s0 = inlined_call_operand.hbm [shape: f32[8,256], index: 0, kind: input, shape index: {}]
  %s1 = inlined_call_operand.hbm [shape: f32[8,256], index: 1, kind: output, shape index: {}]
  %s2 = sld [smem:[#allocation0]]
  $region18: #{tpu_custom_call.1} parent=0
    _
  %s4 = ssub.s32 1, %s2
  %s5 = scalar_select 0, %s4, %s2
  $region1: #{tpu_custom_call.1} parent=0
    #allocation2 [shape = 'u8[8192]{0}', space=vmem, size = 0x2000, scoped, tag = 'input window, operand 0, single buffered']
    #allocation3 [shape = 's32[1]{0}', space=sflag, size = 0x4, scoped, tag = 'scoped memory for tpu_custom_call.1']
    #allocation4 [shape = 's32[1]{0}', space=sflag, size = 0x4, scoped, tag = 'scoped memory for tpu_custom_call.1']
    #allocation5 [shape = 'u8[8192]{0}', space=vmem, size = 0x2000, scoped, tag = 'output window, operand 0, single buffered']
    %6 = vsyncpa [#allocation3], 0
    %7 = vsyncpa [#allocation4], 0
    // Predicated region
    $region2: #{tpu_custom_call.1} parent=1 // pred_check
      _
    $region3: #{tpu_custom_call.1} parent=1 // pred_check_branch
      %9 = sbr.rel (0) target = $region5
    $region4: #{tpu_custom_call.1} parent=1 // pred_region
      %s11 = ssub.s32 256, 256
      %12 = vsyncadd [#allocation3], %s11
      %s14 = sshll.u32 [#allocation2], 4
      %s15 = int_to_ptr.vmem [resolvable:$true] %s14
      %17 = dma.hbm_to_vmem [thread:$0]  %s0, 256, %s15, [#allocation3]
    $region5: #{tpu_custom_call.1} parent=1 // pred_fallthru
      _
    // Predicated region
    $region6: #{tpu_custom_call.1} parent=1 // pred_check
      _
    $region7: #{tpu_custom_call.1} parent=1 // pred_check_branch
      %19 = sbr.rel (0) target = $region9
    $region8: #{tpu_custom_call.1} parent=1 // pred_region
      %20 = dma.done [#allocation3], 256
    $region9: #{tpu_custom_call.1} parent=1 // pred_fallthru
      _
    %v21 = vld [vmem:[#allocation2] sm:$0xff]
    %v22 = vld [vmem:[#allocation2 + $0x8] sm:$0xff]
    %v23 = vxor.u32 %v21, 2147483648
    %v24 = vxor.u32 %v22, 2147483648
    %v25 = vmul.f32 %v23, 1.442695
    %v26 = vpow.pop %v25
    %v27 = vmul.f32 %v24, 1.442695
    %v28 = vpow.pop %v27
    %v29 = vadd.f32 %v26, 1.0
    %v30 = vadd.f32 %v28, 1.0
    %v31 = vrcp.pop %v29
    %v32 = vmul.f32 1.0, %v31
    %v33 = vrcp.pop %v30
    %v34 = vmul.f32 1.0, %v33
    %v35 = vmul.f32 %v21, %v32
    %v36 = vmul.f32 %v22, %v34
    %37 = vst [vmem:[#allocation5] sm:$0xff] %v35
    %38 = vst [vmem:[#allocation5 + $0x8] sm:$0xff] %v36
    // Predicated region
    $region10: #{tpu_custom_call.1} parent=1 // pred_check
      _
    $region11: #{tpu_custom_call.1} parent=1 // pred_check_branch
      %40 = sbr.rel (0) target = $region13
    $region12: #{tpu_custom_call.1} parent=1 // pred_region
      %s42 = ssub.s32 256, 256
      %43 = vsyncadd [#allocation4], %s42
      %s45 = sshll.u32 [#allocation5], 4
      %s46 = int_to_ptr.vmem [resolvable:$true] %s45
      %48 = dma.vmem_to_hbm [thread:$0]  %s46, 256, %s1, [#allocation4]
    $region13: #{tpu_custom_call.1} parent=1 // pred_fallthru
      _
    // Predicated region
    $region14: #{tpu_custom_call.1} parent=1 // pred_check
      _
    $region15: #{tpu_custom_call.1} parent=1 // pred_check_branch
      %50 = sbr.rel (0) target = $region17
    $region16: #{tpu_custom_call.1} parent=1 // pred_region
      %51 = dma.done [#allocation4], 256
    $region17: #{tpu_custom_call.1} parent=1 // pred_fallthru
      _
    %52 = vsyncpa [#allocation3], 1
    %53 = vsyncpa [#allocation4], 1

</llo_original>
